<compile_context>
chip_gen: v7x
topology: tpu7x:2x2x1
jax: 0.10.0
libtpu: 0.0.40
codegen_flags: <defaults>
</compile_context>

<pallas_src>
import jax
import jax.numpy as jnp
from jax.experimental import pallas as pl
from jax.experimental.pallas import tpu as pltpu

_EPS = 1e-6
_BLOCK_BYTES_BUDGET = 2 * 1024 * 1024  # per-input-block VMEM budget


def _grn_kernel(x_ref, g_ref, b_ref, o_ref):
    # x_ref block: (BB, HW, C); g_ref / b_ref: (1, 1, C); o_ref: (BB, HW, C)
    x = x_ref[...].astype(jnp.float32)                            # (BB, HW, C)

    # Per-channel L2 norm over all spatial positions of each sample.
    gx = jnp.sqrt(jnp.sum(x * x, axis=1, keepdims=True))          # (BB, 1, C)

    # Divisive normalization across channels.
    nx = gx / (jnp.mean(gx, axis=-1, keepdims=True) + _EPS)       # (BB, 1, C)

    # gamma * (x * Nx) + beta + x  ==  x * (gamma * Nx + 1) + beta
    scale = g_ref[...].astype(jnp.float32) * nx + 1.0             # (BB, 1, C)
    bias = b_ref[...].astype(jnp.float32)                         # (1, 1, C)

    o_ref[...] = (x * scale + bias).astype(o_ref.dtype)


def _pick_batch_block(B, per_sample_bytes):
    """Largest divisor of B whose block stays within the VMEM budget."""
    max_bb = max(1, _BLOCK_BYTES_BUDGET // max(per_sample_bytes, 1))
    bb = 1
    for cand in range(1, B + 1):
        if B % cand == 0 and cand <= max_bb:
            bb = cand
    return bb


def grn_forward(x, gamma, beta):
    """GRN forward. x: (B, H, W, C) channels-last; gamma/beta: (C,)."""
    B, H, W, C = x.shape
    HW = H * W

    xf = x.reshape(B, HW, C)            # free row-major view
    g = gamma.reshape(1, 1, C)
    b = beta.reshape(1, 1, C)

    per_sample_bytes = HW * C * x.dtype.itemsize
    BB = _pick_batch_block(B, per_sample_bytes)

    out = pl.pallas_call(
        _grn_kernel,
        out_shape=jax.ShapeDtypeStruct((B, HW, C), x.dtype),
        grid=(B // BB,),
        in_specs=[
            pl.BlockSpec((BB, HW, C), lambda i: (i, 0, 0)),      # batch chunk
            pl.BlockSpec((1, 1, C), lambda i: (0, 0, 0)),        # gamma (resident)
            pl.BlockSpec((1, 1, C), lambda i: (0, 0, 0)),        # beta  (resident)
        ],
        out_specs=pl.BlockSpec((BB, HW, C), lambda i: (i, 0, 0)),
        compiler_params=pltpu.CompilerParams(
            dimension_semantics=("parallel",),                   # megacore on v7x
            vmem_limit_bytes=32 * 1024 * 1024,
        ),
    )(xf, g, b)
    return out.reshape(B, H, W, C)


if __name__ == "__main__":
    key = jax.random.PRNGKey(0)
    kx, kg, kb = jax.random.split(key, 3)

    # Small NHWC input: batch=2, 16x16 spatial, 128 channels (lane-dense).
    B, H, W, C = 2, 16, 16, 128
    x = jax.random.normal(kx, (B, H, W, C), dtype=jnp.float32)
    # Module initializes gamma/beta to zero (identity); use nonzero values
    # here so the correctness check exercises the full formula.
    gamma = 0.1 * jax.random.normal(kg, (C,), dtype=jnp.float32)
    beta = 0.1 * jax.random.normal(kb, (C,), dtype=jnp.float32)

    out = grn_forward(x, gamma, beta)
    out = jax.block_until_ready(out)

    # Pure-JAX reference following the PyTorch formula exactly.
    gx = jnp.sqrt(jnp.sum(x * x, axis=(1, 2), keepdims=True))          # (B,1,1,C)
    nx = gx / (jnp.mean(gx, axis=-1, keepdims=True) + _EPS)            # (B,1,1,C)
    ref = gamma.reshape(1, 1, 1, C) * (x * nx) + beta.reshape(1, 1, 1, C) + x

    assert out.shape == x.shape
    assert jnp.allclose(out, ref, atol=1e-5, rtol=1e-5), "mismatch vs reference"
    print("KERNEL_OK")
</pallas_src>

<mosaic_0001>
module attributes {stable_mosaic.version = 11 : i64} {
  func.func @_grn_kernel(%arg0: i32, %arg1: memref<2x256x128xf32, #tpu.memory_space<vmem>>, %arg2: memref<1x1x128xf32, #tpu.memory_space<vmem>>, %arg3: memref<1x1x128xf32, #tpu.memory_space<vmem>>, %arg4: memref<2x256x128xf32, #tpu.memory_space<vmem>>) attributes {dimension_semantics = [#tpu.dimension_semantics<parallel>], iteration_bounds = array<i64: 1>, scalar_prefetch = 0 : i64, scratch_operands = 0 : i64, tpu.core_type = #tpu.core_type<tc>, window_params = [{transform_indices = @transform_0, window_bounds = array<i64: 2, 256, 128>}, {pipeline_mode = #tpu.pipeline_mode<synchronous>, transform_indices = @transform_1, window_bounds = array<i64: 1, 1, 128>}, {pipeline_mode = #tpu.pipeline_mode<synchronous>, transform_indices = @transform_2, window_bounds = array<i64: 1, 1, 128>}, {transform_indices = @transform_3, window_bounds = array<i64: 2, 256, 128>}]} {
    %c0 = arith.constant 0 : index
    %c0_0 = arith.constant 0 : index
    %c0_1 = arith.constant 0 : index
    %0 = vector.load %arg1[%c0, %c0_0, %c0_1] : memref<2x256x128xf32, #tpu.memory_space<vmem>>, vector<2x256x128xf32>
    %1 = arith.mulf %0, %0 : vector<2x256x128xf32>
    %cst = arith.constant dense<0.000000e+00> : vector<2x128xf32>
    %2 = vector.multi_reduction <add>, %1, %cst [1] : vector<2x256x128xf32> to vector<2x128xf32>
    %3 = vector.shape_cast %2 : vector<2x128xf32> to vector<2x1x128xf32>
    %4 = math.sqrt %3 : vector<2x1x128xf32>
    %cst_2 = arith.constant dense<0.000000e+00> : vector<2x1xf32>
    %5 = vector.multi_reduction <add>, %4, %cst_2 [2] : vector<2x1x128xf32> to vector<2x1xf32>
    %6 = vector.shape_cast %5 : vector<2x1xf32> to vector<2x1x1xf32>
    %cst_3 = arith.constant 1.280000e+02 : f32
    %7 = vector.broadcast %cst_3 : f32 to vector<2x1x1xf32>
    %8 = arith.divf %6, %7 : vector<2x1x1xf32>
    %cst_4 = arith.constant 9.99999997E-7 : f32
    %9 = vector.broadcast %cst_4 : f32 to vector<2x1x1xf32>
    %10 = arith.addf %8, %9 : vector<2x1x1xf32>
    %11 = vector.broadcast %10 : vector<2x1x1xf32> to vector<2x1x128xf32>
    %12 = arith.divf %4, %11 : vector<2x1x128xf32>
    %c0_5 = arith.constant 0 : index
    %c0_6 = arith.constant 0 : index
    %c0_7 = arith.constant 0 : index
    %13 = vector.load %arg2[%c0_5, %c0_6, %c0_7] : memref<1x1x128xf32, #tpu.memory_space<vmem>>, vector<1x1x128xf32>
    %14 = vector.broadcast %13 : vector<1x1x128xf32> to vector<2x1x128xf32>
    %15 = arith.mulf %14, %12 : vector<2x1x128xf32>
    %cst_8 = arith.constant 1.000000e+00 : f32
    %16 = vector.broadcast %cst_8 : f32 to vector<2x1x128xf32>
    %17 = arith.addf %15, %16 : vector<2x1x128xf32>
    %c0_9 = arith.constant 0 : index
    %c0_10 = arith.constant 0 : index
    %c0_11 = arith.constant 0 : index
    %18 = vector.load %arg3[%c0_9, %c0_10, %c0_11] : memref<1x1x128xf32, #tpu.memory_space<vmem>>, vector<1x1x128xf32>
    %19 = vector.broadcast %17 : vector<2x1x128xf32> to vector<2x256x128xf32>
    %20 = arith.mulf %0, %19 : vector<2x256x128xf32>
    %21 = vector.broadcast %18 : vector<1x1x128xf32> to vector<2x256x128xf32>
    %22 = arith.addf %20, %21 : vector<2x256x128xf32>
    %c0_12 = arith.constant 0 : index
    %c0_13 = arith.constant 0 : index
    %c0_14 = arith.constant 0 : index
    %23 = vector.load %arg4[%c0_12, %c0_13, %c0_14] : memref<2x256x128xf32, #tpu.memory_space<vmem>>, vector<2x256x128xf32>
    tpu.vector_store %arg4[%c0_12, %c0_13, %c0_14], %22 {strides = array<i32>} : memref<2x256x128xf32, #tpu.memory_space<vmem>>, vector<2x256x128xf32>,
    return
  }
  func.func @transform_0(%arg0: i32) -> (i32, i32, i32) {
    %c0_i32 = arith.constant 0 : i32
    %c0_i32_0 = arith.constant 0 : i32
    %c0_i32_1 = arith.constant 0 : i32
    return %arg0, %c0_i32, %c0_i32_0 : i32, i32, i32
  }
  func.func @transform_1(%arg0: i32) -> (i32, i32, i32) {
    %c0_i32 = arith.constant 0 : i32
    %c0_i32_0 = arith.constant 0 : i32
    %c0_i32_1 = arith.constant 0 : i32
    %c0_i32_2 = arith.constant 0 : i32
    return %c0_i32, %c0_i32_0, %c0_i32_1 : i32, i32, i32
  }
  func.func @transform_2(%arg0: i32) -> (i32, i32, i32) {
    %c0_i32 = arith.constant 0 : i32
    %c0_i32_0 = arith.constant 0 : i32
    %c0_i32_1 = arith.constant 0 : i32
    %c0_i32_2 = arith.constant 0 : i32
    return %c0_i32, %c0_i32_0, %c0_i32_1 : i32, i32, i32
  }
  func.func @transform_3(%arg0: i32) -> (i32, i32, i32) {
    %c0_i32 = arith.constant 0 : i32
    %c0_i32_0 = arith.constant 0 : i32
    %c0_i32_1 = arith.constant 0 : i32
    return %arg0, %c0_i32, %c0_i32_0 : i32, i32, i32
  }
}

</mosaic_0001>

<llo_original>
// kernel: tpu_custom_call.1
$region0: #{tpu_custom_call.1}
  #allocation0 [shape = 'u32[]', space=smem, size = 0x4, offset = 0x4, fixed_abs, tag = 'smem constant byte address 0x4 - core index']
  #allocation1 [shape = 'u32[144,128]{1,0:T(1,128)}', space=vmem, size = 0x12000, scoped, tag = 'internal scratch']
  %s0 = inlined_call_operand.hbm [shape: f32[2,256,128], index: 0, kind: input, shape index: {}]
  %s1 = inlined_call_operand.vmem [shape: f32[1,1,128], index: 1, kind: input, shape index: {}]
  %s2 = inlined_call_operand.vmem [shape: f32[1,1,128], index: 2, kind: input, shape index: {}]
  %s3 = inlined_call_operand.hbm [shape: f32[2,256,128], index: 3, kind: output, shape index: {}]
  %s4 = sld [smem:[#allocation0]]
  $region26: #{tpu_custom_call.1} parent=0
    _
  %s6 = ssub.s32 1, %s4
  %s7 = scalar_select 0, %s6, %s4
  $region1: #{tpu_custom_call.1} parent=0
    #allocation2 [shape = 'u8[262144]{0}', space=vmem, size = 0x40000, scoped, tag = 'input window, operand 0, single buffered']
    #allocation3 [shape = 's32[1]{0}', space=sflag, size = 0x4, scoped, tag = 'scoped memory for tpu_custom_call.1']
    #allocation4 [shape = 's32[1]{0}', space=sflag, size = 0x4, scoped, tag = 'scoped memory for tpu_custom_call.1']
    #allocation5 [shape = 'u8[262144]{0}', space=vmem, size = 0x40000, scoped, tag = 'output window, operand 0, single buffered']
    %8 = vsyncpa [#allocation3], 0
    %9 = vsyncpa [#allocation4], 0
    // Predicated region
    $region2: #{tpu_custom_call.1} parent=1 // pred_check
      _
    $region3: #{tpu_custom_call.1} parent=1 // pred_check_branch
      %11 = sbr.rel (0) target = $region5
    $region4: #{tpu_custom_call.1} parent=1 // pred_region
      %s13 = ssub.s32 8192, 8192
      %14 = vsyncadd [#allocation3], %s13
      %s15 = sshll.u32 [#allocation2], 4
      %s16 = int_to_ptr.vmem [resolvable:$true] %s15
      %21 = dma.hbm_to_vmem [thread:$0]  %s0, 8192, %s16, [#allocation3], 128, 128, 8
    $region5: #{tpu_custom_call.1} parent=1 // pred_fallthru
      _
    // Predicated region
    $region6: #{tpu_custom_call.1} parent=1 // pred_check
      _
    $region7: #{tpu_custom_call.1} parent=1 // pred_check_branch
      %23 = sbr.rel (0) target = $region9
    $region8: #{tpu_custom_call.1} parent=1 // pred_region
      _
    $region9: #{tpu_custom_call.1} parent=1 // pred_fallthru
      _
    // Predicated region
    $region10: #{tpu_custom_call.1} parent=1 // pred_check
      _
    $region11: #{tpu_custom_call.1} parent=1 // pred_check_branch
      %25 = sbr.rel (0) target = $region13
    $region12: #{tpu_custom_call.1} parent=1 // pred_region
      _
    $region13: #{tpu_custom_call.1} parent=1 // pred_fallthru
      _
    // Predicated region
    $region14: #{tpu_custom_call.1} parent=1 // pred_check
      _
    $region15: #{tpu_custom_call.1} parent=1 // pred_check_branch
      %27 = sbr.rel (0) target = $region17
    $region16: #{tpu_custom_call.1} parent=1 // pred_region
      %28 = dma.done [#allocation3], 8192
    $region17: #{tpu_custom_call.1} parent=1 // pred_fallthru
      _
    %v29 = vld [vmem:[#allocation2] sm:$0xff]
    %v30 = vld [vmem:[#allocation2 + $0x8] sm:$0xff]
    %v31 = vld [vmem:[#allocation2 + $0x10] sm:$0xff]
    %v32 = vld [vmem:[#allocation2 + $0x18] sm:$0xff]
    %v33 = vld [vmem:[#allocation2 + $0x20] sm:$0xff]
    %v34 = vld [vmem:[#allocation2 + $0x28] sm:$0xff]
    %v35 = vld [vmem:[#allocation2 + $0x30] sm:$0xff]
    %v36 = vld [vmem:[#allocation2 + $0x38] sm:$0xff]
    %v37 = vld [vmem:[#allocation2 + $0x40] sm:$0xff]
    %v38 = vld [vmem:[#allocation2 + $0x48] sm:$0xff]
    %v39 = vld [vmem:[#allocation2 + $0x50] sm:$0xff]
    %v40 = vld [vmem:[#allocation2 + $0x58] sm:$0xff]
    %v41 = vld [vmem:[#allocation2 + $0x60] sm:$0xff]
    %v42 = vld [vmem:[#allocation2 + $0x68] sm:$0xff]
    %v43 = vld [vmem:[#allocation2 + $0x70] sm:$0xff]
    %v44 = vld [vmem:[#allocation2 + $0x78] sm:$0xff]
    %v45 = vld [vmem:[#allocation2 + $0x80] sm:$0xff]
    %v46 = vld [vmem:[#allocation2 + $0x88] sm:$0xff]
    %v47 = vld [vmem:[#allocation2 + $0x90] sm:$0xff]
    %v48 = vld [vmem:[#allocation2 + $0x98] sm:$0xff]
    %v49 = vld [vmem:[#allocation2 + $0xa0] sm:$0xff]
    %v50 = vld [vmem:[#allocation2 + $0xa8] sm:$0xff]
    %v51 = vld [vmem:[#allocation2 + $0xb0] sm:$0xff]
    %v52 = vld [vmem:[#allocation2 + $0xb8] sm:$0xff]
    %v53 = vld [vmem:[#allocation2 + $0xc0] sm:$0xff]
    %v54 = vld [vmem:[#allocation2 + $0xc8] sm:$0xff]
    %v55 = vld [vmem:[#allocation2 + $0xd0] sm:$0xff]
    %v56 = vld [vmem:[#allocation2 + $0xd8] sm:$0xff]
    %v57 = vld [vmem:[#allocation2 + $0xe0] sm:$0xff]
    %v58 = vld [vmem:[#allocation2 + $0xe8] sm:$0xff]
    %v59 = vld [vmem:[#allocation2 + $0xf0] sm:$0xff]
    %v60 = vld [vmem:[#allocation2 + $0xf8] sm:$0xff]
    %v61 = vld [vmem:[#allocation2 + $0x100] sm:$0xff]
    %v62 = vld [vmem:[#allocation2 + $0x108] sm:$0xff]
    %v63 = vld [vmem:[#allocation2 + $0x110] sm:$0xff]
    %v64 = vld [vmem:[#allocation2 + $0x118] sm:$0xff]
    %v65 = vld [vmem:[#allocation2 + $0x120] sm:$0xff]
    %v66 = vld [vmem:[#allocation2 + $0x128] sm:$0xff]
    %v67 = vld [vmem:[#allocation2 + $0x130] sm:$0xff]
    %v68 = vld [vmem:[#allocation2 + $0x138] sm:$0xff]
    %v69 = vld [vmem:[#allocation2 + $0x140] sm:$0xff]
    %v70 = vld [vmem:[#allocation2 + $0x148] sm:$0xff]
    %v71 = vld [vmem:[#allocation2 + $0x150] sm:$0xff]
    %v72 = vld [vmem:[#allocation2 + $0x158] sm:$0xff]
    %v73 = vld [vmem:[#allocation2 + $0x160] sm:$0xff]
    %v74 = vld [vmem:[#allocation2 + $0x168] sm:$0xff]
    %v75 = vld [vmem:[#allocation2 + $0x170] sm:$0xff]
    %v76 = vld [vmem:[#allocation2 + $0x178] sm:$0xff]
    %v77 = vld [vmem:[#allocation2 + $0x180] sm:$0xff]
    %v78 = vld [vmem:[#allocation2 + $0x188] sm:$0xff]
    %v79 = vld [vmem:[#allocation2 + $0x190] sm:$0xff]
    %v80 = vld [vmem:[#allocation2 + $0x198] sm:$0xff]
    %v81 = vld [vmem:[#allocation2 + $0x1a0] sm:$0xff]
    %v82 = vld [vmem:[#allocation2 + $0x1a8] sm:$0xff]
    %v83 = vld [vmem:[#allocation2 + $0x1b0] sm:$0xff]
    %v84 = vld [vmem:[#allocation2 + $0x1b8] sm:$0xff]
    %v85 = vld [vmem:[#allocation2 + $0x1c0] sm:$0xff]
    %v86 = vld [vmem:[#allocation2 + $0x1c8] sm:$0xff]
    %v87 = vld [vmem:[#allocation2 + $0x1d0] sm:$0xff]
    %v88 = vld [vmem:[#allocation2 + $0x1d8] sm:$0xff]
    %v89 = vld [vmem:[#allocation2 + $0x1e0] sm:$0xff]
    %v90 = vld [vmem:[#allocation2 + $0x1e8] sm:$0xff]
    %v91 = vld [vmem:[#allocation2 + $0x1f0] sm:$0xff]
    %v92 = vld [vmem:[#allocation2 + $0x1f8] sm:$0xff]
    %v93 = vmul.f32 %v29, %v29
    %v94 = vmul.f32 %v30, %v30
    %v95 = vmul.f32 %v31, %v31
    %v96 = vmul.f32 %v32, %v32
    %v97 = vmul.f32 %v33, %v33
    %v98 = vmul.f32 %v34, %v34
    %v99 = vmul.f32 %v35, %v35
    %v100 = vmul.f32 %v36, %v36
    %v101 = vmul.f32 %v37, %v37
    %v102 = vmul.f32 %v38, %v38
    %v103 = vmul.f32 %v39, %v39
    %v104 = vmul.f32 %v40, %v40
    %v105 = vmul.f32 %v41, %v41
    %v106 = vmul.f32 %v42, %v42
    %v107 = vmul.f32 %v43, %v43
    %v108 = vmul.f32 %v44, %v44
    %v109 = vmul.f32 %v45, %v45
    %v110 = vmul.f32 %v46, %v46
    %v111 = vmul.f32 %v47, %v47
    %v112 = vmul.f32 %v48, %v48
    %v113 = vmul.f32 %v49, %v49
    %v114 = vmul.f32 %v50, %v50
    %v115 = vmul.f32 %v51, %v51
    %v116 = vmul.f32 %v52, %v52
    %v117 = vmul.f32 %v53, %v53
    %v118 = vmul.f32 %v54, %v54
    %v119 = vmul.f32 %v55, %v55
    %v120 = vmul.f32 %v56, %v56
    %v121 = vmul.f32 %v57, %v57
    %v122 = vmul.f32 %v58, %v58
    %v123 = vmul.f32 %v59, %v59
    %v124 = vmul.f32 %v60, %v60
    %v125 = vmul.f32 %v61, %v61
    %v126 = vmul.f32 %v62, %v62
    %v127 = vmul.f32 %v63, %v63
    %v128 = vmul.f32 %v64, %v64
    %v129 = vmul.f32 %v65, %v65
    %v130 = vmul.f32 %v66, %v66
    %v131 = vmul.f32 %v67, %v67
    %v132 = vmul.f32 %v68, %v68
    %v133 = vmul.f32 %v69, %v69
    %v134 = vmul.f32 %v70, %v70
    %v135 = vmul.f32 %v71, %v71
    %v136 = vmul.f32 %v72, %v72
    %v137 = vmul.f32 %v73, %v73
    %v138 = vmul.f32 %v74, %v74
    %v139 = vmul.f32 %v75, %v75
    %v140 = vmul.f32 %v76, %v76
    %v141 = vmul.f32 %v77, %v77
    %v142 = vmul.f32 %v78, %v78
    %v143 = vmul.f32 %v79, %v79
    %v144 = vmul.f32 %v80, %v80
    %v145 = vmul.f32 %v81, %v81
    %v146 = vmul.f32 %v82, %v82
    %v147 = vmul.f32 %v83, %v83
    %v148 = vmul.f32 %v84, %v84
    %v149 = vmul.f32 %v85, %v85
    %v150 = vmul.f32 %v86, %v86
    %v151 = vmul.f32 %v87, %v87
    %v152 = vmul.f32 %v88, %v88
    %v153 = vmul.f32 %v89, %v89
    %v154 = vmul.f32 %v90, %v90
    %v155 = vmul.f32 %v91, %v91
    %v156 = vmul.f32 %v92, %v92
    %v157 = vadd.f32 %v93, %v94
    %v158 = vadd.f32 %v157, %v95
    %v159 = vadd.f32 %v158, %v96
    %v160 = vadd.f32 %v159, %v97
    %v161 = vadd.f32 %v160, %v98
    %v162 = vadd.f32 %v161, %v99
    %v163 = vadd.f32 %v162, %v100
    %v164 = vadd.f32 %v163, %v101
    %v165 = vadd.f32 %v164, %v102
    %v166 = vadd.f32 %v165, %v103
    %v167 = vadd.f32 %v166, %v104
    %v168 = vadd.f32 %v167, %v105
    %v169 = vadd.f32 %v168, %v106
    %v170 = vadd.f32 %v169, %v107
    %v171 = vadd.f32 %v170, %v108
    %v172 = vadd.f32 %v171, %v109
    %v173 = vadd.f32 %v172, %v110
    %v174 = vadd.f32 %v173, %v111
    %v175 = vadd.f32 %v174, %v112
    %v176 = vadd.f32 %v175, %v113
    %v177 = vadd.f32 %v176, %v114
    %v178 = vadd.f32 %v177, %v115
    %v179 = vadd.f32 %v178, %v116
    %v180 = vadd.f32 %v179, %v117
    %v181 = vadd.f32 %v180, %v118
    %v182 = vadd.f32 %v181, %v119
    %v183 = vadd.f32 %v182, %v120
    %v184 = vadd.f32 %v183, %v121
    %v185 = vadd.f32 %v184, %v122
    %v186 = vadd.f32 %v185, %v123
    %v187 = vadd.f32 %v186, %v124
    %v188 = vrot.slane %v187, 4
    %v189 = vadd.f32 %v187, %v188
    %v190 = vrot.slane %v189, 2
    %v191 = vadd.f32 %v189, %v190
    %v192 = vrot.slane %v191, 1
    %v193 = vadd.f32 %v191, %v192
    %v194 = vadd.f32 %v125, %v126
    %v195 = vadd.f32 %v194, %v127
    %v196 = vadd.f32 %v195, %v128
    %v197 = vadd.f32 %v196, %v129
    %v198 = vadd.f32 %v197, %v130
    %v199 = vadd.f32 %v198, %v131
    %v200 = vadd.f32 %v199, %v132
    %v201 = vadd.f32 %v200, %v133
    %v202 = vadd.f32 %v201, %v134
    %v203 = vadd.f32 %v202, %v135
    %v204 = vadd.f32 %v203, %v136
    %v205 = vadd.f32 %v204, %v137
    %v206 = vadd.f32 %v205, %v138
    %v207 = vadd.f32 %v206, %v139
    %v208 = vadd.f32 %v207, %v140
    %v209 = vadd.f32 %v208, %v141
    %v210 = vadd.f32 %v209, %v142
    %v211 = vadd.f32 %v210, %v143
    %v212 = vadd.f32 %v211, %v144
    %v213 = vadd.f32 %v212, %v145
    %v214 = vadd.f32 %v213, %v146
    %v215 = vadd.f32 %v214, %v147
    %v216 = vadd.f32 %v215, %v148
    %v217 = vadd.f32 %v216, %v149
    %v218 = vadd.f32 %v217, %v150
    %v219 = vadd.f32 %v218, %v151
    %v220 = vadd.f32 %v219, %v152
    %v221 = vadd.f32 %v220, %v153
    %v222 = vadd.f32 %v221, %v154
    %v223 = vadd.f32 %v222, %v155
    %v224 = vadd.f32 %v223, %v156
    %v225 = vrot.slane %v224, 4
    %v226 = vadd.f32 %v224, %v225
    %v227 = vrot.slane %v226, 2
    %v228 = vadd.f32 %v226, %v227
    %v229 = vrot.slane %v228, 1
    %v230 = vadd.f32 %v228, %v229
    %v231 = vrsqrt.pop %v193
    %v232 = vmul.f32 %v193, %v231
    %vm233 = vcmp.eq.f32.partialorder %v193, inf
    %v234 = vsel %vm233, %v193, %v232
    %vm235 = vcmp.eq.f32.partialorder %v193, 0.0
    %v236 = vand.u32 %v193, 2147483648
    %v237 = vsel %vm235, %v236, %v234
    %v238 = vrsqrt.pop %v230
    %v239 = vmul.f32 %v230, %v238
    %vm240 = vcmp.eq.f32.partialorder %v230, inf
    %v241 = vsel %vm240, %v230, %v239
    %vm242 = vcmp.eq.f32.partialorder %v230, 0.0
    %v243 = vand.u32 %v230, 2147483648
    %v244 = vsel %vm242, %v243, %v241
    %245 = vadd.xlane.f32.xlu0 %v237
    %v246 = vpop.xlane.xlu0 %245
    %247 = vadd.xlane.f32.xlu0 %v244
    %v248 = vpop.xlane.xlu0 %247
    %v249 = vrcp.pop 128.0
    %v250 = vmul.f32 %v246, %v249
    %v251 = vmul.f32 %v248, %v249
    %v252 = vadd.f32 %v250, 1e-06
    %v253 = vadd.f32 %v251, 1e-06
    %v254 = vrcp.pop %v252
    %v255 = vmul.f32 %v237, %v254
    %v256 = vrcp.pop %v253
    %v257 = vmul.f32 %v244, %v256
    %v258 = vld [vmem:[%s1] sm:$0x1]
    %v259 = vmul.f32 %v258, %v255
    %v260 = vmul.f32 %v258, %v257
    %v261 = vadd.f32 %v259, 1.0
    %v262 = vadd.f32 %v260, 1.0
    %v263 = vld [vmem:[%s2] sm:$0x1]
    %v266 = vlaneseq
    %v267 = vshrl.u32 %v266, 7
    %v268 = vsub.s32 0, %v267
    %v269 = vrot.slane %v261, %v268
    %v270 = vlaneseq
    %v271 = vshrl.u32 %v270, 7
    %v272 = vsub.s32 0, %v271
    %v273 = vrot.slane %v262, %v272
    %v276 = vmul.f32 %v29, %v269
    %v277 = vmul.f32 %v30, %v269
    %v278 = vmul.f32 %v31, %v269
    %v279 = vmul.f32 %v32, %v269
    %v280 = vmul.f32 %v33, %v269
    %v281 = vmul.f32 %v34, %v269
    %v282 = vmul.f32 %v35, %v269
    %v283 = vmul.f32 %v36, %v269
    %v284 = vmul.f32 %v37, %v269
    %v285 = vmul.f32 %v38, %v269
    %v286 = vmul.f32 %v39, %v269
    %v287 = vmul.f32 %v40, %v269
    %v288 = vmul.f32 %v41, %v269
    %v289 = vmul.f32 %v42, %v269
    %v290 = vmul.f32 %v43, %v269
    %v291 = vmul.f32 %v44, %v269
    %v292 = vmul.f32 %v45, %v269
    %v293 = vmul.f32 %v46, %v269
    %v294 = vmul.f32 %v47, %v269
    %v295 = vmul.f32 %v48, %v269
    %v296 = vmul.f32 %v49, %v269
    %v297 = vmul.f32 %v50, %v269
    %v298 = vmul.f32 %v51, %v269
    %v299 = vmul.f32 %v52, %v269
    %v300 = vmul.f32 %v53, %v269
    %v301 = vmul.f32 %v54, %v269
    %v302 = vmul.f32 %v55, %v269
    %v303 = vmul.f32 %v56, %v269
    %v304 = vmul.f32 %v57, %v269
    %v305 = vmul.f32 %v58, %v269
    %v306 = vmul.f32 %v59, %v269
    %v307 = vmul.f32 %v60, %v269
    %v308 = vmul.f32 %v61, %v273
    %v309 = vmul.f32 %v62, %v273
    %v310 = vmul.f32 %v63, %v273
    %v311 = vmul.f32 %v64, %v273
    %v312 = vmul.f32 %v65, %v273
    %v313 = vmul.f32 %v66, %v273
    %v314 = vmul.f32 %v67, %v273
    %v315 = vmul.f32 %v68, %v273
    %v316 = vmul.f32 %v69, %v273
    %v317 = vmul.f32 %v70, %v273
    %v318 = vmul.f32 %v71, %v273
    %v319 = vmul.f32 %v72, %v273
    %v320 = vmul.f32 %v73, %v273
    %v321 = vmul.f32 %v74, %v273
    %v322 = vmul.f32 %v75, %v273
    %v323 = vmul.f32 %v76, %v273
    %v324 = vmul.f32 %v77, %v273
    %v325 = vmul.f32 %v78, %v273
    %v326 = vmul.f32 %v79, %v273
    %v327 = vmul.f32 %v80, %v273
    %v328 = vmul.f32 %v81, %v273
    %v329 = vmul.f32 %v82, %v273
    %v330 = vmul.f32 %v83, %v273
    %v331 = vmul.f32 %v84, %v273
    %v332 = vmul.f32 %v85, %v273
    %v333 = vmul.f32 %v86, %v273
    %v334 = vmul.f32 %v87, %v273
    %v335 = vmul.f32 %v88, %v273
    %v336 = vmul.f32 %v89, %v273
    %v337 = vmul.f32 %v90, %v273
    %v338 = vmul.f32 %v91, %v273
    %v339 = vmul.f32 %v92, %v273
    %v341 = vlaneseq
    %v342 = vshrl.u32 %v341, 7
    %v343 = vsub.s32 0, %v342
    %v344 = vrot.slane %v263, %v343
    %v346 = vadd.f32 %v276, %v344
    %v347 = vadd.f32 %v277, %v344
    %v348 = vadd.f32 %v278, %v344
    %v349 = vadd.f32 %v279, %v344
    %v350 = vadd.f32 %v280, %v344
    %v351 = vadd.f32 %v281, %v344
    %v352 = vadd.f32 %v282, %v344
    %v353 = vadd.f32 %v283, %v344
    %v354 = vadd.f32 %v284, %v344
    %v355 = vadd.f32 %v285, %v344
    %v356 = vadd.f32 %v286, %v344
    %v357 = vadd.f32 %v287, %v344
    %v358 = vadd.f32 %v288, %v344
    %v359 = vadd.f32 %v289, %v344
    %v360 = vadd.f32 %v290, %v344
    %v361 = vadd.f32 %v291, %v344
    %v362 = vadd.f32 %v292, %v344
    %v363 = vadd.f32 %v293, %v344
    %v364 = vadd.f32 %v294, %v344
    %v365 = vadd.f32 %v295, %v344
    %v366 = vadd.f32 %v296, %v344
    %v367 = vadd.f32 %v297, %v344
    %v368 = vadd.f32 %v298, %v344
    %v369 = vadd.f32 %v299, %v344
    %v370 = vadd.f32 %v300, %v344
    %v371 = vadd.f32 %v301, %v344
    %v372 = vadd.f32 %v302, %v344
    %v373 = vadd.f32 %v303, %v344
    %v374 = vadd.f32 %v304, %v344
    %v375 = vadd.f32 %v305, %v344
    %v376 = vadd.f32 %v306, %v344
    %v377 = vadd.f32 %v307, %v344
    %v378 = vadd.f32 %v308, %v344
    %v379 = vadd.f32 %v309, %v344
    %v380 = vadd.f32 %v310, %v344
    %v381 = vadd.f32 %v311, %v344
    %v382 = vadd.f32 %v312, %v344
    %v383 = vadd.f32 %v313, %v344
    %v384 = vadd.f32 %v314, %v344
    %v385 = vadd.f32 %v315, %v344
    %v386 = vadd.f32 %v316, %v344
    %v387 = vadd.f32 %v317, %v344
    %v388 = vadd.f32 %v318, %v344
    %v389 = vadd.f32 %v319, %v344
    %v390 = vadd.f32 %v320, %v344
    %v391 = vadd.f32 %v321, %v344
    %v392 = vadd.f32 %v322, %v344
    %v393 = vadd.f32 %v323, %v344
    %v394 = vadd.f32 %v324, %v344
    %v395 = vadd.f32 %v325, %v344
    %v396 = vadd.f32 %v326, %v344
    %v397 = vadd.f32 %v327, %v344
    %v398 = vadd.f32 %v328, %v344
    %v399 = vadd.f32 %v329, %v344
    %v400 = vadd.f32 %v330, %v344
    %v401 = vadd.f32 %v331, %v344
    %v402 = vadd.f32 %v332, %v344
    %v403 = vadd.f32 %v333, %v344
    %v404 = vadd.f32 %v334, %v344
    %v405 = vadd.f32 %v335, %v344
    %v406 = vadd.f32 %v336, %v344
    %v407 = vadd.f32 %v337, %v344
    %v408 = vadd.f32 %v338, %v344
    %v409 = vadd.f32 %v339, %v344
    %410 = vst [vmem:[#allocation5] sm:$0xff] %v346
    %411 = vst [vmem:[#allocation5 + $0x8] sm:$0xff] %v347
    %412 = vst [vmem:[#allocation5 + $0x10] sm:$0xff] %v348
    %413 = vst [vmem:[#allocation5 + $0x18] sm:$0xff] %v349
    %414 = vst [vmem:[#allocation5 + $0x20] sm:$0xff] %v350
    %415 = vst [vmem:[#allocation5 + $0x28] sm:$0xff] %v351
    %416 = vst [vmem:[#allocation5 + $0x30] sm:$0xff] %v352
    %417 = vst [vmem:[#allocation5 + $0x38] sm:$0xff] %v353
    %418 = vst [vmem:[#allocation5 + $0x40] sm:$0xff] %v354
    %419 = vst [vmem:[#allocation5 + $0x48] sm:$0xff] %v355
    %420 = vst [vmem:[#allocation5 + $0x50] sm:$0xff] %v356
    %421 = vst [vmem:[#allocation5 + $0x58] sm:$0xff] %v357
    %422 = vst [vmem:[#allocation5 + $0x60] sm:$0xff] %v358
    %423 = vst [vmem:[#allocation5 + $0x68] sm:$0xff] %v359
    %424 = vst [vmem:[#allocation5 + $0x70] sm:$0xff] %v360
    %425 = vst [vmem:[#allocation5 + $0x78] sm:$0xff] %v361
    %426 = vst [vmem:[#allocation5 + $0x80] sm:$0xff] %v362
    %427 = vst [vmem:[#allocation5 + $0x88] sm:$0xff] %v363
    %428 = vst [vmem:[#allocation5 + $0x90] sm:$0xff] %v364
    %429 = vst [vmem:[#allocation5 + $0x98] sm:$0xff] %v365
    %430 = vst [vmem:[#allocation5 + $0xa0] sm:$0xff] %v366
    %431 = vst [vmem:[#allocation5 + $0xa8] sm:$0xff] %v367
    %432 = vst [vmem:[#allocation5 + $0xb0] sm:$0xff] %v368
    %433 = vst [vmem:[#allocation5 + $0xb8] sm:$0xff] %v369
    %434 = vst [vmem:[#allocation5 + $0xc0] sm:$0xff] %v370
    %435 = vst [vmem:[#allocation5 + $0xc8] sm:$0xff] %v371
    %436 = vst [vmem:[#allocation5 + $0xd0] sm:$0xff] %v372
    %437 = vst [vmem:[#allocation5 + $0xd8] sm:$0xff] %v373
    %438 = vst [vmem:[#allocation5 + $0xe0] sm:$0xff] %v374
    %439 = vst [vmem:[#allocation5 + $0xe8] sm:$0xff] %v375
    %440 = vst [vmem:[#allocation5 + $0xf0] sm:$0xff] %v376
    %441 = vst [vmem:[#allocation5 + $0xf8] sm:$0xff] %v377
    %442 = vst [vmem:[#allocation5 + $0x100] sm:$0xff] %v378
    %443 = vst [vmem:[#allocation5 + $0x108] sm:$0xff] %v379
    %444 = vst [vmem:[#allocation5 + $0x110] sm:$0xff] %v380
    %445 = vst [vmem:[#allocation5 + $0x118] sm:$0xff] %v381
    %446 = vst [vmem:[#allocation5 + $0x120] sm:$0xff] %v382
    %447 = vst [vmem:[#allocation5 + $0x128] sm:$0xff] %v383
    %448 = vst [vmem:[#allocation5 + $0x130] sm:$0xff] %v384
    %449 = vst [vmem:[#allocation5 + $0x138] sm:$0xff] %v385
    %450 = vst [vmem:[#allocation5 + $0x140] sm:$0xff] %v386
    %451 = vst [vmem:[#allocation5 + $0x148] sm:$0xff] %v387
    %452 = vst [vmem:[#allocation5 + $0x150] sm:$0xff] %v388
    %453 = vst [vmem:[#allocation5 + $0x158] sm:$0xff] %v389
    %454 = vst [vmem:[#allocation5 + $0x160] sm:$0xff] %v390
    %455 = vst [vmem:[#allocation5 + $0x168] sm:$0xff] %v391
    %456 = vst [vmem:[#allocation5 + $0x170] sm:$0xff] %v392
    %457 = vst [vmem:[#allocation5 + $0x178] sm:$0xff] %v393
    %458 = vst [vmem:[#allocation5 + $0x180] sm:$0xff] %v394
    %459 = vst [vmem:[#allocation5 + $0x188] sm:$0xff] %v395
    %460 = vst [vmem:[#allocation5 + $0x190] sm:$0xff] %v396
    %461 = vst [vmem:[#allocation5 + $0x198] sm:$0xff] %v397
    %462 = vst [vmem:[#allocation5 + $0x1a0] sm:$0xff] %v398
    %463 = vst [vmem:[#allocation5 + $0x1a8] sm:$0xff] %v399
    %464 = vst [vmem:[#allocation5 + $0x1b0] sm:$0xff] %v400
    %465 = vst [vmem:[#allocation5 + $0x1b8] sm:$0xff] %v401
    %466 = vst [vmem:[#allocation5 + $0x1c0] sm:$0xff] %v402
    %467 = vst [vmem:[#allocation5 + $0x1c8] sm:$0xff] %v403
    %468 = vst [vmem:[#allocation5 + $0x1d0] sm:$0xff] %v404
    %469 = vst [vmem:[#allocation5 + $0x1d8] sm:$0xff] %v405
    %470 = vst [vmem:[#allocation5 + $0x1e0] sm:$0xff] %v406
    %471 = vst [vmem:[#allocation5 + $0x1e8] sm:$0xff] %v407
    %472 = vst [vmem:[#allocation5 + $0x1f0] sm:$0xff] %v408
    %473 = vst [vmem:[#allocation5 + $0x1f8] sm:$0xff] %v409
    // Predicated region
    $region18: #{tpu_custom_call.1} parent=1 // pred_check
      _
    $region19: #{tpu_custom_call.1} parent=1 // pred_check_branch
      %475 = sbr.rel (0) target = $region21
    $region20: #{tpu_custom_call.1} parent=1 // pred_region
      %s477 = ssub.s32 8192, 8192
      %478 = vsyncadd [#allocation4], %s477
      %s479 = sshll.u32 [#allocation5], 4
      %s480 = int_to_ptr.vmem [resolvable:$true] %s479
      %485 = dma.vmem_to_hbm [thread:$0]  %s480, 8192, %s3, [#allocation4], 128, 128, 8
    $region21: #{tpu_custom_call.1} parent=1 // pred_fallthru
      _
    // Predicated region
    $region22: #{tpu_custom_call.1} parent=1 // pred_check
      _
    $region23: #{tpu_custom_call.1} parent=1 // pred_check_branch
      %487 = sbr.rel (0) target = $region25
    $region24: #{tpu_custom_call.1} parent=1 // pred_region
      %488 = dma.done [#allocation4], 8192
    $region25: #{tpu_custom_call.1} parent=1 // pred_fallthru
      _
    %489 = vsyncpa [#allocation3], 1
    %490 = vsyncpa [#allocation4], 1

</llo_original>
